<compile_context>
chip_gen: v6e
topology: v6e:2x2x1
jax: 0.10.0
libtpu: 0.0.40
codegen_flags: <defaults>
</compile_context>

<pallas_src>
import functools

import jax
import jax.numpy as jnp
from jax import lax
from jax.experimental import pallas as pl
from jax.experimental.pallas import tpu as pltpu


def _round_up(x, m):
    return ((x + m - 1) // m) * m


def dnn_vbf_kernel(
    x_ref,                    # (TB, F)  f32  streamed (batch rows on sublanes)
    w1_ref, c1_ref,           # (128, F) f32 (scale-folded), (128, 1) f32  resident
    w2_ref, c2_ref,           # (64, 128) f32,               (64, 1)  f32  resident
    w3_ref, c3_ref,           # (32, 64) f32,                (32, 1)  f32  resident
    wo_ref, bo_ref,           # (32, 1) f32, (1, 1) f32                    resident
    out_ref,                  # (1, TB) f32  (lane-dense output row)
    *, chunk,
):
    w1 = w1_ref[...]
    c1 = c1_ref[...]
    w2 = w2_ref[...]
    c2 = c2_ref[...]
    w3 = w3_ref[...]
    c3 = c3_ref[...]
    wo = wo_ref[...]
    bo = bo_ref[...]

    tb = out_ref.shape[1]
    n_chunks = tb // chunk

    # Statically unrolled sub-chunk loop: lets the MXU matmul of the next chunk
    # overlap the VPU/EUP (shift+tanh) and XLU (sublane reduce) of the current
    # one instead of running the whole chain serially at full-tile granularity.
    for c in range(n_chunks):
        lo = c * chunk
        xc = x_ref[pl.ds(lo, chunk), :].astype(jnp.float32)          # (chunk, F)

        # fc1 (BN scale folded into w1): contract both operands on the feature
        # axis -> feature-major (128, chunk) activations, no materialized x^T.
        h1 = lax.dot_general(w1, xc, (((1,), (1,)), ((), ())),
                             preferred_element_type=jnp.float32)      # (128, chunk)
        h1 = jnp.tanh(h1 + c1)                                        # bn shift + tanh

        # fc2 -> bn2(shift) -> tanh
        h2 = jnp.dot(w2, h1, preferred_element_type=jnp.float32)      # (64, chunk)
        h2 = jnp.tanh(h2 + c2)

        # fc3 -> bn3(shift) -> tanh
        h3 = jnp.dot(w3, h2, preferred_element_type=jnp.float32)      # (32, chunk)
        h3 = jnp.tanh(h3 + c3)

        # Output Linear (32 -> 1) off the MXU: VPU multiply + sublane reduce,
        # producing a lane-dense (1, chunk) logit row.  Exact sigmoid.
        logits = jnp.sum(h3 * wo, axis=0, keepdims=True) + bo
        out_ref[:, pl.ds(lo, chunk)] = (
            1.0 / (1.0 + jnp.exp(-logits))
        ).astype(out_ref.dtype)


def _fold_params(params, eps=1e-5):
    """Fold Linear bias + BatchNorm1d (eval) into scaled weights + a shift.

    y = ((x @ W + b) - mean) / sqrt(var + eps) * gamma + beta
      = x @ (W * scale) + ((b - mean) * scale + beta)

    Weights are returned transposed, (out, in), for the feature-major layout;
    shifts as (out, 1) columns.  All folding is done in f32.
    """
    def fold(w, b, g, beta, rm, rv):
        scale = (g / jnp.sqrt(rv + eps)).astype(jnp.float32)                 # (out,)
        shift = ((b - rm) * scale + beta).astype(jnp.float32)                # (out,)
        w_scaled = w.astype(jnp.float32).T * scale[:, None]                  # (out, in)
        return w_scaled, shift.reshape(-1, 1)

    w1s, c1 = fold(params["w1"], params["b1"], params["g1"], params["beta1"],
                   params["rm1"], params["rv1"])
    w2s, c2 = fold(params["w2"], params["b2"], params["g2"], params["beta2"],
                   params["rm2"], params["rv2"])
    w3s, c3 = fold(params["w3"], params["b3"], params["g3"], params["beta3"],
                   params["rm3"], params["rv3"])
    wo = params["wo"].astype(jnp.float32).reshape(-1, 1)                      # (32, 1)
    bo = params["bo"].astype(jnp.float32).reshape(1, 1)                       # (1, 1)
    return w1s, c1, w2s, c2, w3s, c3, wo, bo


@functools.partial(jax.jit, static_argnames=("block_batch",))
def dnn_vbf_forward(x, params, block_batch=8192):
    B, F = x.shape
    x = x.astype(jnp.float32)
    block_batch = max(128, _round_up(block_batch, 128))

    # Batch tile (lane width of the output row): multiple of 128, no padding of
    # x itself — Pallas masks the ragged last block.
    TB = min(block_batch, _round_up(B, 128))
    if B >= 256:
        # Keep at least two grid steps so both TensorCores get work on v7x.
        TB = min(TB, _round_up(pl.cdiv(B, 2), 128))
    G = pl.cdiv(B, TB)

    # In-kernel lane sub-chunk size (must divide TB; TB is a multiple of 128).
    if TB <= 512:
        chunk = TB
    elif TB % 512 == 0:
        chunk = 512
    elif TB % 256 == 0:
        chunk = 256
    else:
        chunk = 128

    w1s, c1, w2s, c2, w3s, c3, wo, bo = _fold_params(params)

    # Constant index_map -> block fetched once, resident in VMEM for all steps.
    const = lambda a: pl.BlockSpec(a.shape, lambda i: (0, 0))

    grid_spec = pltpu.PrefetchScalarGridSpec(
        num_scalar_prefetch=0,
        grid=(G,),
        in_specs=[
            pl.BlockSpec((TB, F), lambda i: (i, 0)),   # x: stream contiguous row tiles
            const(w1s), const(c1),
            const(w2s), const(c2),
            const(w3s), const(c3),
            const(wo), const(bo),
        ],
        out_specs=pl.BlockSpec((1, TB), lambda i: (0, i)),   # lane-dense output row
    )

    out_row = pl.pallas_call(
        functools.partial(dnn_vbf_kernel, chunk=chunk),
        out_shape=jax.ShapeDtypeStruct((1, B), jnp.float32),
        grid_spec=grid_spec,
        compiler_params=pltpu.CompilerParams(
            dimension_semantics=("parallel",),   # megacore sharding on v7x
            vmem_limit_bytes=32 << 20,           # headroom for big tiles on v5e
        ),
    )(x, w1s, c1, w2s, c2, w3s, c3, wo, bo)

    return out_row[0, :].reshape(B, 1)


def init_params(key, input_shape):
    """Deterministic synthetic parameters matching DnnVBF.__init__ shapes."""
    ks = jax.random.split(key, 16)

    def lin(kw, kb, fan_in, fan_out):
        # PyTorch Linear default: U(-1/sqrt(fan_in), 1/sqrt(fan_in))
        bound = 1.0 / jnp.sqrt(fan_in)
        w = jax.random.uniform(kw, (fan_in, fan_out), jnp.float32, -bound, bound)
        b = jax.random.uniform(kb, (fan_out,), jnp.float32, -bound, bound)
        return w, b

    w1, b1 = lin(ks[0], ks[1], input_shape, 128)
    w2, b2 = lin(ks[2], ks[3], 128, 64)
    w3, b3 = lin(ks[4], ks[5], 64, 32)
    wo, bo = lin(ks[6], ks[7], 32, 1)

    def bn(kg, kb, km, kv, n):
        g = 1.0 + 0.1 * jax.random.normal(kg, (n,), jnp.float32)
        beta = 0.1 * jax.random.normal(kb, (n,), jnp.float32)
        rm = 0.1 * jax.random.normal(km, (n,), jnp.float32)
        rv = 1.0 + 0.1 * jax.random.uniform(kv, (n,), jnp.float32)
        return g, beta, rm, rv

    g1, beta1, rm1, rv1 = bn(ks[8], ks[9], ks[10], ks[11], 128)
    g2, beta2, rm2, rv2 = bn(ks[12], ks[13], ks[14], ks[15], 64)
    k2 = jax.random.split(jax.random.fold_in(key, 1), 4)
    g3, beta3, rm3, rv3 = bn(k2[0], k2[1], k2[2], k2[3], 32)

    return dict(
        w1=w1, b1=b1, g1=g1, beta1=beta1, rm1=rm1, rv1=rv1,
        w2=w2, b2=b2, g2=g2, beta2=beta2, rm2=rm2, rv2=rv2,
        w3=w3, b3=b3, g3=g3, beta3=beta3, rm3=rm3, rv3=rv3,
        wo=wo, bo=bo,
    )


def reference_forward(x, params):
    """Pure-JAX f32 reference of the PyTorch forward (eval mode)."""
    eps = 1e-5

    def block(h, w, b, g, beta, rm, rv):
        h = h @ w + b
        h = (h - rm) / jnp.sqrt(rv + eps) * g + beta
        return jnp.tanh(h)

    h = block(x, params["w1"], params["b1"], params["g1"], params["beta1"],
              params["rm1"], params["rv1"])
    h = block(h, params["w2"], params["b2"], params["g2"], params["beta2"],
              params["rm2"], params["rv2"])
    h = block(h, params["w3"], params["b3"], params["g3"], params["beta3"],
              params["rm3"], params["rv3"])
    return jax.nn.sigmoid(h @ params["wo"] + params["bo"])


if __name__ == "__main__":
    key = jax.random.PRNGKey(0)
    kx, kp, kx2, kx3 = jax.random.split(key, 4)

    input_shape = 16
    params = init_params(kp, input_shape)

    # Test 1: tiny batch — single ragged tile, masked output lanes.
    x = jax.random.normal(kx, (8, input_shape), jnp.float32)
    out = jax.block_until_ready(dnn_vbf_forward(x, params))
    ref = reference_forward(x, params)
    assert out.shape == (8, 1)
    assert float(jnp.max(jnp.abs(out - ref))) < 1e-4, (out, ref)

    # Test 2: multi-tile grid with a ragged last tile (300 = 2*128 + 44).
    x2 = jax.random.normal(kx2, (300, input_shape), jnp.float32)
    out2 = jax.block_until_ready(dnn_vbf_forward(x2, params, block_batch=128))
    ref2 = reference_forward(x2, params)
    assert out2.shape == (300, 1)
    assert float(jnp.max(jnp.abs(out2 - ref2))) < 1e-4

    # Test 3: exercises the in-kernel lane sub-chunking (TB=1024 -> 2x 512-lane
    # chunks) and the >=2-grid-step megacore split.
    x3 = jax.random.normal(kx3, (2048, input_shape), jnp.float32)
    out3 = jax.block_until_ready(dnn_vbf_forward(x3, params))
    ref3 = reference_forward(x3, params)
    assert out3.shape == (2048, 1)
    assert float(jnp.max(jnp.abs(out3 - ref3))) < 1e-4

    print("KERNEL_OK")
</pallas_src>

<mosaic_0001>
module attributes {stable_mosaic.version = 11 : i64} {
  func.func @dnn_vbf_kernel(%arg0: i32, %arg1: memref<128x16xf32, #tpu.memory_space<vmem>>, %arg2: memref<128x16xf32, #tpu.memory_space<vmem>>, %arg3: memref<128x1xf32, #tpu.memory_space<vmem>>, %arg4: memref<64x128xf32, #tpu.memory_space<vmem>>, %arg5: memref<64x1xf32, #tpu.memory_space<vmem>>, %arg6: memref<32x64xf32, #tpu.memory_space<vmem>>, %arg7: memref<32x1xf32, #tpu.memory_space<vmem>>, %arg8: memref<32x1xf32, #tpu.memory_space<vmem>>, %arg9: memref<1x1xf32, #tpu.memory_space<vmem>>, %arg10: memref<1x128xf32, #tpu.memory_space<vmem>>) attributes {dimension_semantics = [#tpu.dimension_semantics<parallel>], iteration_bounds = array<i64: 1>, scalar_prefetch = 0 : i64, scratch_operands = 0 : i64, tpu.core_type = #tpu.core_type<tc>, window_params = [{transform_indices = @transform_0, window_bounds = array<i64: 128, 16>}, {pipeline_mode = #tpu.pipeline_mode<synchronous>, transform_indices = @transform_1, window_bounds = array<i64: 128, 16>}, {pipeline_mode = #tpu.pipeline_mode<synchronous>, transform_indices = @transform_2, window_bounds = array<i64: 128, 1>}, {pipeline_mode = #tpu.pipeline_mode<synchronous>, transform_indices = @transform_3, window_bounds = array<i64: 64, 128>}, {pipeline_mode = #tpu.pipeline_mode<synchronous>, transform_indices = @transform_4, window_bounds = array<i64: 64, 1>}, {pipeline_mode = #tpu.pipeline_mode<synchronous>, transform_indices = @transform_5, window_bounds = array<i64: 32, 64>}, {pipeline_mode = #tpu.pipeline_mode<synchronous>, transform_indices = @transform_6, window_bounds = array<i64: 32, 1>}, {pipeline_mode = #tpu.pipeline_mode<synchronous>, transform_indices = @transform_7, window_bounds = array<i64: 32, 1>}, {pipeline_mode = #tpu.pipeline_mode<synchronous>, transform_indices = @transform_8, window_bounds = array<i64: 1, 1>}, {transform_indices = @transform_9, window_bounds = array<i64: 1, 128>}]} {
    %c0 = arith.constant 0 : index
    %c0_0 = arith.constant 0 : index
    %0 = vector.load %arg2[%c0, %c0_0] : memref<128x16xf32, #tpu.memory_space<vmem>>, vector<128x16xf32>
    %c0_1 = arith.constant 0 : index
    %c0_2 = arith.constant 0 : index
    %1 = vector.load %arg3[%c0_1, %c0_2] : memref<128x1xf32, #tpu.memory_space<vmem>>, vector<128x1xf32>
    %c0_3 = arith.constant 0 : index
    %c0_4 = arith.constant 0 : index
    %2 = vector.load %arg4[%c0_3, %c0_4] : memref<64x128xf32, #tpu.memory_space<vmem>>, vector<64x128xf32>
    %c0_5 = arith.constant 0 : index
    %c0_6 = arith.constant 0 : index
    %3 = vector.load %arg5[%c0_5, %c0_6] : memref<64x1xf32, #tpu.memory_space<vmem>>, vector<64x1xf32>
    %c0_7 = arith.constant 0 : index
    %c0_8 = arith.constant 0 : index
    %4 = vector.load %arg6[%c0_7, %c0_8] : memref<32x64xf32, #tpu.memory_space<vmem>>, vector<32x64xf32>
    %c0_9 = arith.constant 0 : index
    %c0_10 = arith.constant 0 : index
    %5 = vector.load %arg7[%c0_9, %c0_10] : memref<32x1xf32, #tpu.memory_space<vmem>>, vector<32x1xf32>
    %c0_11 = arith.constant 0 : index
    %c0_12 = arith.constant 0 : index
    %6 = vector.load %arg8[%c0_11, %c0_12] : memref<32x1xf32, #tpu.memory_space<vmem>>, vector<32x1xf32>
    %c0_13 = arith.constant 0 : index
    %c0_14 = arith.constant 0 : index
    %7 = vector.load %arg9[%c0_13, %c0_14] : memref<1x1xf32, #tpu.memory_space<vmem>>, vector<1x1xf32>
    %c0_15 = arith.constant 0 : index
    %c0_16 = arith.constant 0 : index
    %8 = vector.load %arg1[%c0_15, %c0_16] : memref<128x16xf32, #tpu.memory_space<vmem>>, vector<128x16xf32>
    %cst = arith.constant dense<0.000000e+00> : vector<128x128xf32>
    %9 = tpu.matmul %0, %8, %cst {dimension_numbers = #tpu.dot_dimension_numbers<[1], [1], [0], [0], [0, 0, 1, 0], [], []>} : vector<128x16xf32>, vector<128x16xf32>, vector<128x128xf32> -> vector<128x128xf32>
    %10 = vector.broadcast %1 : vector<128x1xf32> to vector<128x128xf32>
    %11 = arith.addf %9, %10 : vector<128x128xf32>
    %12 = math.tanh %11 : vector<128x128xf32>
    %cst_17 = arith.constant dense<0.000000e+00> : vector<64x128xf32>
    %13 = tpu.matmul %2, %12, %cst_17 {dimension_numbers = #tpu.dot_dimension_numbers<[1], [0], [0], [1], [0, 0, 1, 1], [], []>} : vector<64x128xf32>, vector<128x128xf32>, vector<64x128xf32> -> vector<64x128xf32>
    %14 = vector.broadcast %3 : vector<64x1xf32> to vector<64x128xf32>
    %15 = arith.addf %13, %14 : vector<64x128xf32>
    %16 = math.tanh %15 : vector<64x128xf32>
    %cst_18 = arith.constant dense<0.000000e+00> : vector<32x128xf32>
    %17 = tpu.matmul %4, %16, %cst_18 {dimension_numbers = #tpu.dot_dimension_numbers<[1], [0], [0], [1], [0, 0, 1, 1], [], []>} : vector<32x64xf32>, vector<64x128xf32>, vector<32x128xf32> -> vector<32x128xf32>
    %18 = vector.broadcast %5 : vector<32x1xf32> to vector<32x128xf32>
    %19 = arith.addf %17, %18 : vector<32x128xf32>
    %20 = math.tanh %19 : vector<32x128xf32>
    %21 = vector.broadcast %6 : vector<32x1xf32> to vector<32x128xf32>
    %22 = arith.mulf %20, %21 : vector<32x128xf32>
    %cst_19 = arith.constant dense<0.000000e+00> : vector<128xf32>
    %23 = vector.multi_reduction <add>, %22, %cst_19 [0] : vector<32x128xf32> to vector<128xf32>
    %24 = vector.shape_cast %23 : vector<128xf32> to vector<1x128xf32>
    %25 = vector.broadcast %7 : vector<1x1xf32> to vector<1x128xf32>
    %26 = arith.addf %24, %25 : vector<1x128xf32>
    %cst_20 = arith.constant 0.000000e+00 : f32
    %27 = vector.broadcast %cst_20 : f32 to vector<1x128xf32>
    %28 = arith.subf %27, %26 : vector<1x128xf32>
    %29 = math.exp %28 : vector<1x128xf32>
    %cst_21 = arith.constant 1.000000e+00 : f32
    %30 = vector.broadcast %cst_21 : f32 to vector<1x128xf32>
    %31 = arith.addf %30, %29 : vector<1x128xf32>
    %cst_22 = arith.constant 1.000000e+00 : f32
    %32 = vector.broadcast %cst_22 : f32 to vector<1x128xf32>
    %33 = arith.divf %32, %31 : vector<1x128xf32>
    %c0_23 = arith.constant 0 : index
    %c0_24 = arith.constant 0 : index
    %34 = vector.load %arg10[%c0_23, %c0_24] : memref<1x128xf32, #tpu.memory_space<vmem>>, vector<1x128xf32>
    tpu.vector_store %arg10[%c0_23, %c0_24], %33 {strides = array<i32>} : memref<1x128xf32, #tpu.memory_space<vmem>>, vector<1x128xf32>,
    return
  }
  func.func @transform_0(%arg0: i32) -> (i32, i32) {
    %c0_i32 = arith.constant 0 : i32
    %c0_i32_0 = arith.constant 0 : i32
    return %arg0, %c0_i32 : i32, i32
  }
  func.func @transform_1(%arg0: i32) -> (i32, i32) {
    %c0_i32 = arith.constant 0 : i32
    %c0_i32_0 = arith.constant 0 : i32
    %c0_i32_1 = arith.constant 0 : i32
    return %c0_i32, %c0_i32_0 : i32, i32
  }
  func.func @transform_2(%arg0: i32) -> (i32, i32) {
    %c0_i32 = arith.constant 0 : i32
    %c0_i32_0 = arith.constant 0 : i32
    %c0_i32_1 = arith.constant 0 : i32
    return %c0_i32, %c0_i32_0 : i32, i32
  }
  func.func @transform_3(%arg0: i32) -> (i32, i32) {
    %c0_i32 = arith.constant 0 : i32
    %c0_i32_0 = arith.constant 0 : i32
    %c0_i32_1 = arith.constant 0 : i32
    return %c0_i32, %c0_i32_0 : i32, i32
  }
  func.func @transform_4(%arg0: i32) -> (i32, i32) {
    %c0_i32 = arith.constant 0 : i32
    %c0_i32_0 = arith.constant 0 : i32
    %c0_i32_1 = arith.constant 0 : i32
    return %c0_i32, %c0_i32_0 : i32, i32
  }
  func.func @transform_5(%arg0: i32) -> (i32, i32) {
    %c0_i32 = arith.constant 0 : i32
    %c0_i32_0 = arith.constant 0 : i32
    %c0_i32_1 = arith.constant 0 : i32
    return %c0_i32, %c0_i32_0 : i32, i32
  }
  func.func @transform_6(%arg0: i32) -> (i32, i32) {
    %c0_i32 = arith.constant 0 : i32
    %c0_i32_0 = arith.constant 0 : i32
    %c0_i32_1 = arith.constant 0 : i32
    return %c0_i32, %c0_i32_0 : i32, i32
  }
  func.func @transform_7(%arg0: i32) -> (i32, i32) {
    %c0_i32 = arith.constant 0 : i32
    %c0_i32_0 = arith.constant 0 : i32
    %c0_i32_1 = arith.constant 0 : i32
    return %c0_i32, %c0_i32_0 : i32, i32
  }
  func.func @transform_8(%arg0: i32) -> (i32, i32) {
    %c0_i32 = arith.constant 0 : i32
    %c0_i32_0 = arith.constant 0 : i32
    %c0_i32_1 = arith.constant 0 : i32
    return %c0_i32, %c0_i32_0 : i32, i32
  }
  func.func @transform_9(%arg0: i32) -> (i32, i32) {
    %c0_i32 = arith.constant 0 : i32
    %c0_i32_0 = arith.constant 0 : i32
    return %c0_i32, %arg0 : i32, i32
  }
}

</mosaic_0001>

<llo_original>
// kernel: dnn_vbf_forward.1
$region0: #{dnn_vbf_forward.1}
  #allocation0 [shape = 'u32[]', space=smem, size = 0x4, offset = 0x4, fixed_abs, tag = 'smem constant byte address 0x4 - core index']
  #allocation1 [shape = 'u32[144,128]{1,0:T(1,128)}', space=vmem, size = 0x12000, scoped, tag = 'internal scratch']
  #allocation2 [shape = 'f32[1,1]{1,0:T(1,128)S(1)}', space=vmem, size = 0x200, scoped, tag = 'scoped memory for dnn_vbf_forward.1']
  %s0 = inlined_call_operand.vmem [shape: f32[8,16], index: 0, kind: input, shape index: {}]
  %s1 = inlined_call_operand.vmem [shape: f32[128,16], index: 1, kind: input, shape index: {}]
  %s2 = inlined_call_operand.vmem [shape: f32[128,1], index: 2, kind: input, shape index: {}]
  %s3 = inlined_call_operand.vmem [shape: f32[64,128], index: 3, kind: input, shape index: {}]
  %s4 = inlined_call_operand.vmem [shape: f32[64,1], index: 4, kind: input, shape index: {}]
  %s5 = inlined_call_operand.vmem [shape: f32[32,64], index: 5, kind: input, shape index: {}]
  %s6 = inlined_call_operand.vmem [shape: f32[32,1], index: 6, kind: input, shape index: {}]
  %s7 = inlined_call_operand.vmem [shape: f32[32,1], index: 7, kind: input, shape index: {}]
  %s8 = inlined_call_operand.<no memory space> [shape: f32[1,1], index: 8, kind: input, shape index: {}]
  %s9 = inlined_call_operand.hbm [shape: f32[1,8], index: 9, kind: output, shape index: {}]
  %s10 = sld [smem:[#allocation0]]
  $region46: #{dnn_vbf_forward.1} parent=0
    _
  %s12 = ssub.s32 1, %s10
  %s13 = scalar_select 0, %s12, %s10
  %v14 = vstv %s8
  %15 = vst [vmem:[#allocation2] sm:$0x1] %v14
  $region1: #{dnn_vbf_forward.1} parent=0
    #allocation3 [shape = 'u8[512]{0}', space=vmem, size = 0x400, scoped, tag = 'output window, operand 0, single buffered']
    #allocation4 [shape = 's32[1]{0}', space=sflag, size = 0x4, scoped, tag = 'scoped memory for dnn_vbf_forward.1']
    %16 = vsyncpa [#allocation4], 0
    // Predicated region
    $region2: #{dnn_vbf_forward.1} parent=1 // pred_check
      _
    $region3: #{dnn_vbf_forward.1} parent=1 // pred_check_branch
      %18 = sbr.rel (0) target = $region5
    $region4: #{dnn_vbf_forward.1} parent=1 // pred_region
      _
    $region5: #{dnn_vbf_forward.1} parent=1 // pred_fallthru
      _
    // Predicated region
    $region6: #{dnn_vbf_forward.1} parent=1 // pred_check
      _
    $region7: #{dnn_vbf_forward.1} parent=1 // pred_check_branch
      %20 = sbr.rel (0) target = $region9
    $region8: #{dnn_vbf_forward.1} parent=1 // pred_region
      _
    $region9: #{dnn_vbf_forward.1} parent=1 // pred_fallthru
      _
    // Predicated region
    $region10: #{dnn_vbf_forward.1} parent=1 // pred_check
      _
    $region11: #{dnn_vbf_forward.1} parent=1 // pred_check_branch
      %22 = sbr.rel (0) target = $region13
    $region12: #{dnn_vbf_forward.1} parent=1 // pred_region
      _
    $region13: #{dnn_vbf_forward.1} parent=1 // pred_fallthru
      _
    // Predicated region
    $region14: #{dnn_vbf_forward.1} parent=1 // pred_check
      _
    $region15: #{dnn_vbf_forward.1} parent=1 // pred_check_branch
      %24 = sbr.rel (0) target = $region17
    $region16: #{dnn_vbf_forward.1} parent=1 // pred_region
      _
    $region17: #{dnn_vbf_forward.1} parent=1 // pred_fallthru
      _
    // Predicated region
    $region18: #{dnn_vbf_forward.1} parent=1 // pred_check
      _
    $region19: #{dnn_vbf_forward.1} parent=1 // pred_check_branch
      %26 = sbr.rel (0) target = $region21
    $region20: #{dnn_vbf_forward.1} parent=1 // pred_region
      _
    $region21: #{dnn_vbf_forward.1} parent=1 // pred_fallthru
      _
    // Predicated region
    $region22: #{dnn_vbf_forward.1} parent=1 // pred_check
      _
    $region23: #{dnn_vbf_forward.1} parent=1 // pred_check_branch
      %28 = sbr.rel (0) target = $region25
    $region24: #{dnn_vbf_forward.1} parent=1 // pred_region
      _
    $region25: #{dnn_vbf_forward.1} parent=1 // pred_fallthru
      _
    // Predicated region
    $region26: #{dnn_vbf_forward.1} parent=1 // pred_check
      _
    $region27: #{dnn_vbf_forward.1} parent=1 // pred_check_branch
      %30 = sbr.rel (0) target = $region29
    $region28: #{dnn_vbf_forward.1} parent=1 // pred_region
      _
    $region29: #{dnn_vbf_forward.1} parent=1 // pred_fallthru
      _
    // Predicated region
    $region30: #{dnn_vbf_forward.1} parent=1 // pred_check
      _
    $region31: #{dnn_vbf_forward.1} parent=1 // pred_check_branch
      %32 = sbr.rel (0) target = $region33
    $region32: #{dnn_vbf_forward.1} parent=1 // pred_region
      _
    $region33: #{dnn_vbf_forward.1} parent=1 // pred_fallthru
      _
    // Predicated region
    $region34: #{dnn_vbf_forward.1} parent=1 // pred_check
      _
    $region35: #{dnn_vbf_forward.1} parent=1 // pred_check_branch
      %34 = sbr.rel (0) target = $region37
    $region36: #{dnn_vbf_forward.1} parent=1 // pred_region
      _
    $region37: #{dnn_vbf_forward.1} parent=1 // pred_fallthru
      _
    %v35 = vld [vmem:[%s1] sm:$0xff]
    %v36 = vld [vmem:[%s1 + $0x8] sm:$0xff]
    %v37 = vld [vmem:[%s1 + $0x10] sm:$0xff]
    %v38 = vld [vmem:[%s1 + $0x18] sm:$0xff]
    %v39 = vld [vmem:[%s1 + $0x20] sm:$0xff]
    %v40 = vld [vmem:[%s1 + $0x28] sm:$0xff]
    %v41 = vld [vmem:[%s1 + $0x30] sm:$0xff]
    %v42 = vld [vmem:[%s1 + $0x38] sm:$0xff]
    %v43 = vld [vmem:[%s1 + $0x40] sm:$0xff]
    %v44 = vld [vmem:[%s1 + $0x48] sm:$0xff]
    %v45 = vld [vmem:[%s1 + $0x50] sm:$0xff]
    %v46 = vld [vmem:[%s1 + $0x58] sm:$0xff]
    %v47 = vld [vmem:[%s1 + $0x60] sm:$0xff]
    %v48 = vld [vmem:[%s1 + $0x68] sm:$0xff]
    %v49 = vld [vmem:[%s1 + $0x70] sm:$0xff]
    %v50 = vld [vmem:[%s1 + $0x78] sm:$0xff]
    %v51 = vld [vmem:[%s2] sm:$0xff]
    %v52 = vld [vmem:[%s2 + $0x8] sm:$0xff]
    %v53 = vld [vmem:[%s2 + $0x10] sm:$0xff]
    %v54 = vld [vmem:[%s2 + $0x18] sm:$0xff]
    %v55 = vld [vmem:[%s2 + $0x20] sm:$0xff]
    %v56 = vld [vmem:[%s2 + $0x28] sm:$0xff]
    %v57 = vld [vmem:[%s2 + $0x30] sm:$0xff]
    %v58 = vld [vmem:[%s2 + $0x38] sm:$0xff]
    %v59 = vld [vmem:[%s2 + $0x40] sm:$0xff]
    %v60 = vld [vmem:[%s2 + $0x48] sm:$0xff]
    %v61 = vld [vmem:[%s2 + $0x50] sm:$0xff]
    %v62 = vld [vmem:[%s2 + $0x58] sm:$0xff]
    %v63 = vld [vmem:[%s2 + $0x60] sm:$0xff]
    %v64 = vld [vmem:[%s2 + $0x68] sm:$0xff]
    %v65 = vld [vmem:[%s2 + $0x70] sm:$0xff]
    %v66 = vld [vmem:[%s2 + $0x78] sm:$0xff]
    %v67 = vld [vmem:[%s3] sm:$0xff]
    %v68 = vld [vmem:[%s3 + $0x8] sm:$0xff]
    %v69 = vld [vmem:[%s3 + $0x10] sm:$0xff]
    %v70 = vld [vmem:[%s3 + $0x18] sm:$0xff]
    %v71 = vld [vmem:[%s3 + $0x20] sm:$0xff]
    %v72 = vld [vmem:[%s3 + $0x28] sm:$0xff]
    %v73 = vld [vmem:[%s3 + $0x30] sm:$0xff]
    %v74 = vld [vmem:[%s3 + $0x38] sm:$0xff]
    %v75 = vld [vmem:[%s4] sm:$0xff]
    %v76 = vld [vmem:[%s4 + $0x8] sm:$0xff]
    %v77 = vld [vmem:[%s4 + $0x10] sm:$0xff]
    %v78 = vld [vmem:[%s4 + $0x18] sm:$0xff]
    %v79 = vld [vmem:[%s4 + $0x20] sm:$0xff]
    %v80 = vld [vmem:[%s4 + $0x28] sm:$0xff]
    %v81 = vld [vmem:[%s4 + $0x30] sm:$0xff]
    %v82 = vld [vmem:[%s4 + $0x38] sm:$0xff]
    %v83 = vld [vmem:[%s5] sm:$0xff]
    %v84 = vld [vmem:[%s5 + $0x8] sm:$0xff]
    %v85 = vld [vmem:[%s5 + $0x10] sm:$0xff]
    %v86 = vld [vmem:[%s5 + $0x18] sm:$0xff]
    %v87 = vld [vmem:[%s6] sm:$0xff]
    %v88 = vld [vmem:[%s6 + $0x8] sm:$0xff]
    %v89 = vld [vmem:[%s6 + $0x10] sm:$0xff]
    %v90 = vld [vmem:[%s6 + $0x18] sm:$0xff]
    %v91 = vld [vmem:[%s7] sm:$0xff]
    %v92 = vld [vmem:[%s7 + $0x8] sm:$0xff]
    %v93 = vld [vmem:[%s7 + $0x10] sm:$0xff]
    %v94 = vld [vmem:[%s7 + $0x18] sm:$0xff]
    %v95 = vld [vmem:[#allocation2] sm:$0x1]
    %v96 = vld [vmem:[%s0] sm:$0xff]
    %v97 = vld [vmem:[%s0 + $0x8] sm:$0xff]
    %v98 = vld [vmem:[%s0 + $0x10] sm:$0xff]
    %v99 = vld [vmem:[%s0 + $0x18] sm:$0xff]
    %v100 = vld [vmem:[%s0 + $0x20] sm:$0xff]
    %v101 = vld [vmem:[%s0 + $0x28] sm:$0xff]
    %v102 = vld [vmem:[%s0 + $0x30] sm:$0xff]
    %v103 = vld [vmem:[%s0 + $0x38] sm:$0xff]
    %v104 = vld [vmem:[%s0 + $0x40] sm:$0xff]
    %v105 = vld [vmem:[%s0 + $0x48] sm:$0xff]
    %v106 = vld [vmem:[%s0 + $0x50] sm:$0xff]
    %v107 = vld [vmem:[%s0 + $0x58] sm:$0xff]
    %v108 = vld [vmem:[%s0 + $0x60] sm:$0xff]
    %v109 = vld [vmem:[%s0 + $0x68] sm:$0xff]
    %v110 = vld [vmem:[%s0 + $0x70] sm:$0xff]
    %v111 = vld [vmem:[%s0 + $0x78] sm:$0xff]
    %113 = vset.pattern.permute.xlu0 0
    %114 = vperm.xlu0 %113, %v51
    %v115 = vpop.permute.xlu0 %114
    %118 = vset.pattern.permute.xlu0 0
    %119 = vperm.xlu0 %118, %v52
    %v120 = vpop.permute.xlu0 %119
    %123 = vset.pattern.permute.xlu0 0
    %124 = vperm.xlu0 %123, %v53
    %v125 = vpop.permute.xlu0 %124
    %128 = vset.pattern.permute.xlu0 0
    %129 = vperm.xlu0 %128, %v54
    %v130 = vpop.permute.xlu0 %129
    %133 = vset.pattern.permute.xlu0 0
    %134 = vperm.xlu0 %133, %v55
    %v135 = vpop.permute.xlu0 %134
    %138 = vset.pattern.permute.xlu0 0
    %139 = vperm.xlu0 %138, %v56
    %v140 = vpop.permute.xlu0 %139
    %143 = vset.pattern.permute.xlu0 0
    %144 = vperm.xlu0 %143, %v57
    %v145 = vpop.permute.xlu0 %144
    %148 = vset.pattern.permute.xlu0 0
    %149 = vperm.xlu0 %148, %v58
    %v150 = vpop.permute.xlu0 %149
    %153 = vset.pattern.permute.xlu0 0
    %154 = vperm.xlu0 %153, %v59
    %v155 = vpop.permute.xlu0 %154
    %158 = vset.pattern.permute.xlu0 0
    %159 = vperm.xlu0 %158, %v60
    %v160 = vpop.permute.xlu0 %159
    %163 = vset.pattern.permute.xlu0 0
    %164 = vperm.xlu0 %163, %v61
    %v165 = vpop.permute.xlu0 %164
    %168 = vset.pattern.permute.xlu0 0
    %169 = vperm.xlu0 %168, %v62
    %v170 = vpop.permute.xlu0 %169
    %173 = vset.pattern.permute.xlu0 0
    %174 = vperm.xlu0 %173, %v63
    %v175 = vpop.permute.xlu0 %174
    %178 = vset.pattern.permute.xlu0 0
    %179 = vperm.xlu0 %178, %v64
    %v180 = vpop.permute.xlu0 %179
    %183 = vset.pattern.permute.xlu0 0
    %184 = vperm.xlu0 %183, %v65
    %v185 = vpop.permute.xlu0 %184
    %188 = vset.pattern.permute.xlu0 0
    %189 = vperm.xlu0 %188, %v66
    %v190 = vpop.permute.xlu0 %189
    %vm192 = vcmask 130048
    %v194 = vsel %vm192, %v35, 0
    %v197 = vsel %vm192, %v36, 0
    %v200 = vsel %vm192, %v37, 0
    %v203 = vsel %vm192, %v38, 0
    %v206 = vsel %vm192, %v39, 0
    %v209 = vsel %vm192, %v40, 0
    %v212 = vsel %vm192, %v41, 0
    %v215 = vsel %vm192, %v42, 0
    %v218 = vsel %vm192, %v43, 0
    %v221 = vsel %vm192, %v44, 0
    %v224 = vsel %vm192, %v45, 0
    %v227 = vsel %vm192, %v46, 0
    %v230 = vsel %vm192, %v47, 0
    %v233 = vsel %vm192, %v48, 0
    %v236 = vsel %vm192, %v49, 0
    %v239 = vsel %vm192, %v50, 0
    %v242 = vsel %vm192, %v96, 0
    %v245 = vsel %vm192, %v97, 0
    %v248 = vsel %vm192, %v98, 0
    %v251 = vsel %vm192, %v99, 0
    %v254 = vsel %vm192, %v100, 0
    %v257 = vsel %vm192, %v101, 0
    %v260 = vsel %vm192, %v102, 0
    %v263 = vsel %vm192, %v103, 0
    %v266 = vsel %vm192, %v104, 0
    %v269 = vsel %vm192, %v105, 0
    %v272 = vsel %vm192, %v106, 0
    %v275 = vsel %vm192, %v107, 0
    %v278 = vsel %vm192, %v108, 0
    %v281 = vsel %vm192, %v109, 0
    %v284 = vsel %vm192, %v110, 0
    %v287 = vsel %vm192, %v111, 0
    %289 = vmatprep.subr.mxu0 0.0
    %290 = vmatpush1.xpose.msra.mxu0 %v287
    %291 = vmatprep.subr.mxu0 0.0
    %292 = vmatpush1.xpose.msra.mxu0 %v284
    %293 = vmatprep.subr.mxu0 0.0
    %294 = vmatpush1.xpose.msra.mxu0 %v281
    %295 = vmatprep.subr.mxu0 0.0
    %296 = vmatpush1.xpose.msra.mxu0 %v278
    %297 = vmatprep.subr.mxu0 0.0
    %298 = vmatpush1.xpose.msra.mxu0 %v275
    %299 = vmatprep.subr.mxu0 0.0
    %300 = vmatpush1.xpose.msra.mxu0 %v272
    %301 = vmatprep.subr.mxu0 0.0
    %302 = vmatpush1.xpose.msra.mxu0 %v269
    %303 = vmatprep.subr.mxu0 0.0
    %304 = vmatpush1.xpose.msra.mxu0 %v266
    %305 = vmatprep.subr.mxu0 0.0
    %306 = vmatpush1.xpose.msra.mxu0 %v263
    %307 = vmatprep.subr.mxu0 0.0
    %308 = vmatpush1.xpose.msra.mxu0 %v260
    %309 = vmatprep.subr.mxu0 0.0
    %310 = vmatpush1.xpose.msra.mxu0 %v257
    %311 = vmatprep.subr.mxu0 0.0
    %312 = vmatpush1.xpose.msra.mxu0 %v254
    %313 = vmatprep.subr.mxu0 0.0
    %314 = vmatpush1.xpose.msra.mxu0 %v251
    %315 = vmatprep.subr.mxu0 0.0
    %316 = vmatpush1.xpose.msra.mxu0 %v248
    %317 = vmatprep.subr.mxu0 0.0
    %318 = vmatpush1.xpose.msra.mxu0 %v245
    %319 = vmatprep.subr.mxu0 0.0
    %320 = vmatpush1.xpose.msra.mxu0 %v242
    %321 = vmatprep.subr.mxu0 0.0
    %322 = vmatpush2.xpose.msra.mxu0 0.0
    %323 = vmatprep.subr.mxu0 0.0
    %324 = vmatpush2.xpose.msra.mxu0 0.0
    %325 = vmatprep.subr.mxu0 0.0
    %326 = vmatpush2.xpose.msra.mxu0 0.0
    %327 = vmatprep.subr.mxu0 0.0
    %328 = vmatpush2.xpose.msra.mxu0 0.0
    %329 = vmatprep.subr.mxu0 0.0
    %330 = vmatpush2.xpose.msra.mxu0 0.0
    %331 = vmatprep.subr.mxu0 0.0
    %332 = vmatpush2.xpose.msra.mxu0 0.0
    %333 = vmatprep.subr.mxu0 0.0
    %334 = vmatpush2.xpose.msra.mxu0 0.0
    %335 = vmatprep.subr.mxu0 0.0
    %336 = vmatpush2.xpose.msra.mxu0 0.0
    %337 = vmatprep.subr.mxu0 0.0
    %338 = vmatpush2.xpose.msra.mxu0 0.0
    %339 = vmatprep.subr.mxu0 0.0
    %340 = vmatpush2.xpose.msra.mxu0 0.0
    %341 = vmatprep.subr.mxu0 0.0
    %342 = vmatpush2.xpose.msra.mxu0 0.0
    %343 = vmatprep.subr.mxu0 0.0
    %344 = vmatpush2.xpose.msra.mxu0 0.0
    %345 = vmatprep.subr.mxu0 0.0
    %346 = vmatpush2.xpose.msra.mxu0 0.0
    %347 = vmatprep.subr.mxu0 0.0
    %348 = vmatpush2.xpose.msra.mxu0 0.0
    %349 = vmatprep.subr.mxu0 0.0
    %350 = vmatpush2.xpose.msra.mxu0 0.0
    %351 = vmatprep.subr.mxu0 0.0
    %352 = vmatpush2.xpose.msra.mxu0 0.0
    %353 = vmatprep.mubr.f32.mxu0 0.0
    %354 = vmatmul.mubr.f32.gmra.mxu0 %v194
    %v355 = vpop.f32.mrf.mxu0
    %v356 = vadd.f32 %v115, %v355
    %v357 = vpop.f32.mrf.mxu0
    %358 = vmatprep.mubr.f32.mxu0 0.0
    %359 = vmatmul.mubr.f32.gmra.mxu0 %v197
    %v360 = vpop.f32.mrf.mxu0
    %v361 = vadd.f32 %v120, %v360
    %v362 = vpop.f32.mrf.mxu0
    %363 = vmatprep.mubr.f32.mxu0 0.0
    %364 = vmatmul.mubr.f32.gmra.mxu0 %v200
    %v365 = vpop.f32.mrf.mxu0
    %v366 = vadd.f32 %v125, %v365
    %v367 = vpop.f32.mrf.mxu0
    %368 = vmatprep.mubr.f32.mxu0 0.0
    %369 = vmatmul.mubr.f32.gmra.mxu0 %v203
    %v370 = vpop.f32.mrf.mxu0
    %v371 = vadd.f32 %v130, %v370
    %v372 = vpop.f32.mrf.mxu0
    %373 = vmatprep.mubr.f32.mxu0 0.0
    %374 = vmatmul.mubr.f32.gmra.mxu0 %v206
    %v375 = vpop.f32.mrf.mxu0
    %v376 = vadd.f32 %v135, %v375
    %v377 = vpop.f32.mrf.mxu0
    %378 = vmatprep.mubr.f32.mxu0 0.0
    %379 = vmatmul.mubr.f32.gmra.mxu0 %v209
    %v380 = vpop.f32.mrf.mxu0
    %v381 = vadd.f32 %v140, %v380
    %v382 = vpop.f32.mrf.mxu0
    %383 = vmatprep.mubr.f32.mxu0 0.0
    %384 = vmatmul.mubr.f32.gmra.mxu0 %v212
    %v385 = vpop.f32.mrf.mxu0
    %v386 = vadd.f32 %v145, %v385
    %v387 = vpop.f32.mrf.mxu0
    %388 = vmatprep.mubr.f32.mxu0 0.0
    %389 = vmatmul.mubr.f32.gmra.mxu0 %v215
    %v390 = vpop.f32.mrf.mxu0
    %v391 = vadd.f32 %v150, %v390
    %v392 = vpop.f32.mrf.mxu0
    %393 = vmatprep.mubr.f32.mxu0 0.0
    %394 = vmatmul.mubr.f32.gmra.mxu0 %v218
    %v395 = vpop.f32.mrf.mxu0
    %v396 = vadd.f32 %v155, %v395
    %v397 = vpop.f32.mrf.mxu0
    %398 = vmatprep.mubr.f32.mxu0 0.0
    %399 = vmatmul.mubr.f32.gmra.mxu0 %v221
    %v400 = vpop.f32.mrf.mxu0
    %v401 = vadd.f32 %v160, %v400
    %v402 = vpop.f32.mrf.mxu0
    %403 = vmatprep.mubr.f32.mxu0 0.0
    %404 = vmatmul.mubr.f32.gmra.mxu0 %v224
    %v405 = vpop.f32.mrf.mxu0
    %v406 = vadd.f32 %v165, %v405
    %v407 = vpop.f32.mrf.mxu0
    %408 = vmatprep.mubr.f32.mxu0 0.0
    %409 = vmatmul.mubr.f32.gmra.mxu0 %v227
    %v410 = vpop.f32.mrf.mxu0
    %v411 = vadd.f32 %v170, %v410
    %v412 = vpop.f32.mrf.mxu0
    %413 = vmatprep.mubr.f32.mxu0 0.0
    %414 = vmatmul.mubr.f32.gmra.mxu0 %v230
    %v415 = vpop.f32.mrf.mxu0
    %v416 = vadd.f32 %v175, %v415
    %v417 = vpop.f32.mrf.mxu0
    %418 = vmatprep.mubr.f32.mxu0 0.0
    %419 = vmatmul.mubr.f32.gmra.mxu0 %v233
    %v420 = vpop.f32.mrf.mxu0
    %v421 = vadd.f32 %v180, %v420
    %v422 = vpop.f32.mrf.mxu0
    %423 = vmatprep.mubr.f32.mxu0 0.0
    %424 = vmatmul.mubr.f32.gmra.mxu0 %v236
    %v425 = vpop.f32.mrf.mxu0
    %v426 = vadd.f32 %v185, %v425
    %v427 = vpop.f32.mrf.mxu0
    %428 = vmatprep.mubr.f32.mxu0 0.0
    %429 = vmatmul.mubr.f32.gmra.mxu0 %v239
    %v430 = vpop.f32.mrf.mxu0
    %v431 = vadd.f32 %v190, %v430
    %v432 = vpop.f32.mrf.mxu0
    %433 = vdwg.mxu0
    %v434 = vtanh.pop %v356
    %v435 = vtanh.pop %v361
    %v436 = vtanh.pop %v366
    %v437 = vtanh.pop %v371
    %v438 = vtanh.pop %v376
    %v439 = vtanh.pop %v381
    %v440 = vtanh.pop %v386
    %v441 = vtanh.pop %v391
    %v442 = vtanh.pop %v396
    %v443 = vtanh.pop %v401
    %v444 = vtanh.pop %v406
    %v445 = vtanh.pop %v411
    %v446 = vtanh.pop %v416
    %v447 = vtanh.pop %v421
    %v448 = vtanh.pop %v426
    %v449 = vtanh.pop %v431
    %451 = vset.pattern.permute.xlu0 0
    %452 = vperm.xlu0 %451, %v75
    %v453 = vpop.permute.xlu0 %452
    %456 = vset.pattern.permute.xlu0 0
    %457 = vperm.xlu0 %456, %v76
    %v458 = vpop.permute.xlu0 %457
    %461 = vset.pattern.permute.xlu0 0
    %462 = vperm.xlu0 %461, %v77
    %v463 = vpop.permute.xlu0 %462
    %466 = vset.pattern.permute.xlu0 0
    %467 = vperm.xlu0 %466, %v78
    %v468 = vpop.permute.xlu0 %467
    %471 = vset.pattern.permute.xlu0 0
    %472 = vperm.xlu0 %471, %v79
    %v473 = vpop.permute.xlu0 %472
    %476 = vset.pattern.permute.xlu0 0
    %477 = vperm.xlu0 %476, %v80
    %v478 = vpop.permute.xlu0 %477
    %481 = vset.pattern.permute.xlu0 0
    %482 = vperm.xlu0 %481, %v81
    %v483 = vpop.permute.xlu0 %482
    %486 = vset.pattern.permute.xlu0 0
    %487 = vperm.xlu0 %486, %v82
    %v488 = vpop.permute.xlu0 %487
    %490 = vmatprep.subr.mxu0 0.0
    %491 = vmatpush1.msra.mxu0 %v449
    %492 = vmatprep.subr.mxu0 0.0
    %493 = vmatpush1.msra.mxu0 %v448
    %494 = vmatprep.subr.mxu0 0.0
    %495 = vmatpush1.msra.mxu0 %v447
    %496 = vmatprep.subr.mxu0 0.0
    %497 = vmatpush1.msra.mxu0 %v446
    %498 = vmatprep.subr.mxu0 0.0
    %499 = vmatpush1.msra.mxu0 %v445
    %500 = vmatprep.subr.mxu0 0.0
    %501 = vmatpush1.msra.mxu0 %v444
    %502 = vmatprep.subr.mxu0 0.0
    %503 = vmatpush1.msra.mxu0 %v443
    %504 = vmatprep.subr.mxu0 0.0
    %505 = vmatpush1.msra.mxu0 %v442
    %506 = vmatprep.subr.mxu0 0.0
    %507 = vmatpush1.msra.mxu0 %v441
    %508 = vmatprep.subr.mxu0 0.0
    %509 = vmatpush1.msra.mxu0 %v440
    %510 = vmatprep.subr.mxu0 0.0
    %511 = vmatpush1.msra.mxu0 %v439
    %512 = vmatprep.subr.mxu0 0.0
    %513 = vmatpush1.msra.mxu0 %v438
    %514 = vmatprep.subr.mxu0 0.0
    %515 = vmatpush1.msra.mxu0 %v437
    %516 = vmatprep.subr.mxu0 0.0
    %517 = vmatpush1.msra.mxu0 %v436
    %518 = vmatprep.subr.mxu0 0.0
    %519 = vmatpush1.msra.mxu0 %v435
    %520 = vmatprep.subr.mxu0 0.0
    %521 = vmatpush1.msra.mxu0 %v434
    %522 = vmatprep.subr.mxu0 0.0
    %523 = vmatpush2.msra.mxu0 0.0
    %524 = vmatprep.subr.mxu0 0.0
    %525 = vmatpush2.msra.mxu0 0.0
    %526 = vmatprep.subr.mxu0 0.0
    %527 = vmatpush2.msra.mxu0 0.0
    %528 = vmatprep.subr.mxu0 0.0
    %529 = vmatpush2.msra.mxu0 0.0
    %530 = vmatprep.subr.mxu0 0.0
    %531 = vmatpush2.msra.mxu0 0.0
    %532 = vmatprep.subr.mxu0 0.0
    %533 = vmatpush2.msra.mxu0 0.0
    %534 = vmatprep.subr.mxu0 0.0
    %535 = vmatpush2.msra.mxu0 0.0
    %536 = vmatprep.subr.mxu0 0.0
    %537 = vmatpush2.msra.mxu0 0.0
    %538 = vmatprep.subr.mxu0 0.0
    %539 = vmatpush2.msra.mxu0 0.0
    %540 = vmatprep.subr.mxu0 0.0
    %541 = vmatpush2.msra.mxu0 0.0
    %542 = vmatprep.subr.mxu0 0.0
    %543 = vmatpush2.msra.mxu0 0.0
    %544 = vmatprep.subr.mxu0 0.0
    %545 = vmatpush2.msra.mxu0 0.0
    %546 = vmatprep.subr.mxu0 0.0
    %547 = vmatpush2.msra.mxu0 0.0
    %548 = vmatprep.subr.mxu0 0.0
    %549 = vmatpush2.msra.mxu0 0.0
    %550 = vmatprep.subr.mxu0 0.0
    %551 = vmatpush2.msra.mxu0 0.0
    %552 = vmatprep.subr.mxu0 0.0
    %553 = vmatpush2.msra.mxu0 0.0
    %554 = vmatprep.mubr.f32.mxu0 0.0
    %555 = vmatmul.mubr.f32.gmra.mxu0 %v67
    %v556 = vpop.f32.mrf.mxu0
    %v557 = vadd.f32 %v453, %v556
    %v558 = vpop.f32.mrf.mxu0
    %559 = vmatprep.mubr.f32.mxu0 0.0
    %560 = vmatmul.mubr.f32.gmra.mxu0 %v68
    %v561 = vpop.f32.mrf.mxu0
    %v562 = vadd.f32 %v458, %v561
    %v563 = vpop.f32.mrf.mxu0
    %564 = vmatprep.mubr.f32.mxu0 0.0
    %565 = vmatmul.mubr.f32.gmra.mxu0 %v69
    %v566 = vpop.f32.mrf.mxu0
    %v567 = vadd.f32 %v463, %v566
    %v568 = vpop.f32.mrf.mxu0
    %569 = vmatprep.mubr.f32.mxu0 0.0
    %570 = vmatmul.mubr.f32.gmra.mxu0 %v70
    %v571 = vpop.f32.mrf.mxu0
    %v572 = vadd.f32 %v468, %v571
    %v573 = vpop.f32.mrf.mxu0
    %574 = vmatprep.mubr.f32.mxu0 0.0
    %575 = vmatmul.mubr.f32.gmra.mxu0 %v71
    %v576 = vpop.f32.mrf.mxu0
    %v577 = vadd.f32 %v473, %v576
    %v578 = vpop.f32.mrf.mxu0
    %579 = vmatprep.mubr.f32.mxu0 0.0
    %580 = vmatmul.mubr.f32.gmra.mxu0 %v72
    %v581 = vpop.f32.mrf.mxu0
    %v582 = vadd.f32 %v478, %v581
    %v583 = vpop.f32.mrf.mxu0
    %584 = vmatprep.mubr.f32.mxu0 0.0
    %585 = vmatmul.mubr.f32.gmra.mxu0 %v73
    %v586 = vpop.f32.mrf.mxu0
    %v587 = vadd.f32 %v483, %v586
    %v588 = vpop.f32.mrf.mxu0
    %589 = vmatprep.mubr.f32.mxu0 0.0
    %590 = vmatmul.mubr.f32.gmra.mxu0 %v74
    %v591 = vpop.f32.mrf.mxu0
    %v592 = vadd.f32 %v488, %v591
    %v593 = vpop.f32.mrf.mxu0
    %594 = vdwg.mxu0
    %v595 = vtanh.pop %v557
    %v596 = vtanh.pop %v562
    %v597 = vtanh.pop %v567
    %v598 = vtanh.pop %v572
    %v599 = vtanh.pop %v577
    %v600 = vtanh.pop %v582
    %v601 = vtanh.pop %v587
    %v602 = vtanh.pop %v592
    %604 = vset.pattern.permute.xlu0 0
    %605 = vperm.xlu0 %604, %v87
    %v606 = vpop.permute.xlu0 %605
    %609 = vset.pattern.permute.xlu0 0
    %610 = vperm.xlu0 %609, %v88
    %v611 = vpop.permute.xlu0 %610
    %614 = vset.pattern.permute.xlu0 0
    %615 = vperm.xlu0 %614, %v89
    %v616 = vpop.permute.xlu0 %615
    %619 = vset.pattern.permute.xlu0 0
    %620 = vperm.xlu0 %619, %v90
    %v621 = vpop.permute.xlu0 %620
    %vm623 = vcmask 523264
    %v625 = vsel %vm623, %v83, 0
    %v628 = vsel %vm623, %v84, 0
    %v631 = vsel %vm623, %v85, 0
    %v634 = vsel %vm623, %v86, 0
    %636 = vmatprep.subr.mxu0 0.0
    %637 = vmatpush1.msra.mxu0 0.0
    %638 = vmatprep.subr.mxu0 0.0
    %639 = vmatpush1.msra.mxu0 0.0
    %640 = vmatprep.subr.mxu0 0.0
    %641 = vmatpush1.msra.mxu0 0.0
    %642 = vmatprep.subr.mxu0 0.0
    %643 = vmatpush1.msra.mxu0 0.0
    %644 = vmatprep.subr.mxu0 0.0
    %645 = vmatpush1.msra.mxu0 0.0
    %646 = vmatprep.subr.mxu0 0.0
    %647 = vmatpush1.msra.mxu0 0.0
    %648 = vmatprep.subr.mxu0 0.0
    %649 = vmatpush1.msra.mxu0 0.0
    %650 = vmatprep.subr.mxu0 0.0
    %651 = vmatpush1.msra.mxu0 0.0
    %652 = vmatprep.subr.mxu0 0.0
    %653 = vmatpush1.msra.mxu0 %v602
    %654 = vmatprep.subr.mxu0 0.0
    %655 = vmatpush1.msra.mxu0 %v601
    %656 = vmatprep.subr.mxu0 0.0
    %657 = vmatpush1.msra.mxu0 %v600
    %658 = vmatprep.subr.mxu0 0.0
    %659 = vmatpush1.msra.mxu0 %v599
    %660 = vmatprep.subr.mxu0 0.0
    %661 = vmatpush1.msra.mxu0 %v598
    %662 = vmatprep.subr.mxu0 0.0
    %663 = vmatpush1.msra.mxu0 %v597
    %664 = vmatprep.subr.mxu0 0.0
    %665 = vmatpush1.msra.mxu0 %v596
    %666 = vmatprep.subr.mxu0 0.0
    %667 = vmatpush1.msra.mxu0 %v595
    %668 = vmatprep.subr.mxu0 0.0
    %669 = vmatpush2.msra.mxu0 0.0
    %670 = vmatprep.subr.mxu0 0.0
    %671 = vmatpush2.msra.mxu0 0.0
    %672 = vmatprep.subr.mxu0 0.0
    %673 = vmatpush2.msra.mxu0 0.0
    %674 = vmatprep.subr.mxu0 0.0
    %675 = vmatpush2.msra.mxu0 0.0
    %676 = vmatprep.subr.mxu0 0.0
    %677 = vmatpush2.msra.mxu0 0.0
    %678 = vmatprep.subr.mxu0 0.0
    %679 = vmatpush2.msra.mxu0 0.0
    %680 = vmatprep.subr.mxu0 0.0
    %681 = vmatpush2.msra.mxu0 0.0
    %682 = vmatprep.subr.mxu0 0.0
    %683 = vmatpush2.msra.mxu0 0.0
    %684 = vmatprep.subr.mxu0 0.0
    %685 = vmatpush2.msra.mxu0 0.0
    %686 = vmatprep.subr.mxu0 0.0
    %687 = vmatpush2.msra.mxu0 0.0
    %688 = vmatprep.subr.mxu0 0.0
    %689 = vmatpush2.msra.mxu0 0.0
    %690 = vmatprep.subr.mxu0 0.0
    %691 = vmatpush2.msra.mxu0 0.0
    %692 = vmatprep.subr.mxu0 0.0
    %693 = vmatpush2.msra.mxu0 0.0
    %694 = vmatprep.subr.mxu0 0.0
    %695 = vmatpush2.msra.mxu0 0.0
    %696 = vmatprep.subr.mxu0 0.0
    %697 = vmatpush2.msra.mxu0 0.0
    %698 = vmatprep.subr.mxu0 0.0
    %699 = vmatpush2.msra.mxu0 0.0
    %700 = vmatprep.mubr.f32.mxu0 0.0
    %701 = vmatmul.mubr.f32.gmra.mxu0 %v625
    %v702 = vpop.f32.mrf.mxu0
    %v703 = vadd.f32 %v606, %v702
    %v704 = vpop.f32.mrf.mxu0
    %705 = vmatprep.mubr.f32.mxu0 0.0
    %706 = vmatmul.mubr.f32.gmra.mxu0 %v628
    %v707 = vpop.f32.mrf.mxu0
    %v708 = vadd.f32 %v611, %v707
    %v709 = vpop.f32.mrf.mxu0
    %710 = vmatprep.mubr.f32.mxu0 0.0
    %711 = vmatmul.mubr.f32.gmra.mxu0 %v631
    %v712 = vpop.f32.mrf.mxu0
    %v713 = vadd.f32 %v616, %v712
    %v714 = vpop.f32.mrf.mxu0
    %715 = vmatprep.mubr.f32.mxu0 0.0
    %716 = vmatmul.mubr.f32.gmra.mxu0 %v634
    %v717 = vpop.f32.mrf.mxu0
    %v718 = vadd.f32 %v621, %v717
    %v719 = vpop.f32.mrf.mxu0
    %720 = vdwg.mxu0
    %v721 = vtanh.pop %v703
    %v722 = vtanh.pop %v708
    %v723 = vtanh.pop %v713
    %v724 = vtanh.pop %v718
    %726 = vset.pattern.permute.xlu0 0
    %727 = vperm.xlu0 %726, %v91
    %v728 = vpop.permute.xlu0 %727
    %731 = vset.pattern.permute.xlu0 0
    %732 = vperm.xlu0 %731, %v92
    %v733 = vpop.permute.xlu0 %732
    %736 = vset.pattern.permute.xlu0 0
    %737 = vperm.xlu0 %736, %v93
    %v738 = vpop.permute.xlu0 %737
    %741 = vset.pattern.permute.xlu0 0
    %742 = vperm.xlu0 %741, %v94
    %v743 = vpop.permute.xlu0 %742
    %v745 = vmul.f32 %v721, %v728
    %v746 = vmul.f32 %v722, %v733
    %v747 = vmul.f32 %v723, %v738
    %v748 = vmul.f32 %v724, %v743
    %v749 = vadd.f32 %v745, %v746
    %v750 = vadd.f32 %v749, %v747
    %v751 = vadd.f32 %v750, %v748
    %v752 = vrot.slane %v751, 4
    %v753 = vadd.f32 %v751, %v752
    %v754 = vrot.slane %v753, 2
    %v755 = vadd.f32 %v753, %v754
    %v756 = vrot.slane %v755, 1
    %v757 = vadd.f32 %v755, %v756
    %759 = vset.pattern.permute.xlu0 0
    %760 = vperm.xlu0 %759, %v95
    %v761 = vpop.permute.xlu0 %760
    %v763 = vlaneseq
    %v764 = vshrl.u32 %v763, 7
    %v765 = vsub.s32 0, %v764
    %v766 = vrot.slane %v761, %v765
    %v767 = vadd.f32 %v757, %v766
    %v768 = vsub.f32 0.0, %v767
    %v769 = vmul.f32 %v768, 1.442695
    %v770 = vpow.pop %v769
    %v771 = vadd.f32 %v770, 1.0
    %v772 = vrcp.pop %v771
    %v773 = vmul.f32 1.0, %v772
    %774 = vst [vmem:[#allocation3] sm:$0x1] %v773
    // Predicated region
    $region38: #{dnn_vbf_forward.1} parent=1 // pred_check
      _
    $region39: #{dnn_vbf_forward.1} parent=1 // pred_check_branch
      %776 = sbr.rel (0) target = $region41
    $region40: #{dnn_vbf_forward.1} parent=1 // pred_region
      %s778 = ssub.s32 16, 16
      %779 = vsyncadd [#allocation4], %s778
      %s781 = sshll.u32 [#allocation3], 4
      %s782 = int_to_ptr.vmem [resolvable:$true] %s781
      %784 = dma.vmem_to_hbm [thread:$0]  %s782, 16, %s9, [#allocation4]
    $region41: #{dnn_vbf_forward.1} parent=1 // pred_fallthru
      _
    // Predicated region
    $region42: #{dnn_vbf_forward.1} parent=1 // pred_check
      _
    $region43: #{dnn_vbf_forward.1} parent=1 // pred_check_branch
      %786 = sbr.rel (0) target = $region45
    $region44: #{dnn_vbf_forward.1} parent=1 // pred_region
      %787 = dma.done [#allocation4], 16
    $region45: #{dnn_vbf_forward.1} parent=1 // pred_fallthru
      _
    %788 = vsyncpa [#allocation4], 1

</llo_original>
